<compile_context>
chip_gen: v6e
topology: v6e:2x2x1
jax: 0.10.0
libtpu: 0.0.40
codegen_flags: <defaults>
</compile_context>

<pallas_src>
import functools

import numpy as np
import jax
import jax.numpy as jnp
from jax.experimental import pallas as pl
from jax.experimental.pallas import tpu as pltpu


_VMEM_BUDGET_BYTES = 16 * 1024 * 1024   # accounted working set (see _auto_block_rows)
_VMEM_LIMIT_BYTES = 32 * 1024 * 1024    # scoped-VMEM limit passed to Mosaic: 2x headroom
                                        # over the accounting, <= v7x default (32 of 64 MiB
                                        # physical), and raises v5e's 16 MiB default.


def _round_up(x, m):
    return ((x + m - 1) // m) * m


def _auto_block_rows(n, v, itemsize):
    """Rows per tile: large enough to amortize the ~0.35us/step pipeline overhead,
    capped so 2 streams x 2 pipeline buffers + the [tn,2] aux block (lane-padded
    to 128) + ~4 live [tn,V] f32 temporaries fit the accounted VMEM budget."""
    v_pad = _round_up(max(v, 1), 128)                  # VMEM lane padding for V < 128
    bytes_per_row = (2 * 2 * v_pad * itemsize          # scores + soft, double-buffered
                     + 2 * 128 * 4                     # aux [tn,2] pads to 128 lanes, 2 buffers
                     + 4 * v_pad * 4)                  # ~4 live f32 [tn,V] temporaries
    tn = int(_VMEM_BUDGET_BYTES // bytes_per_row)
    tn = min(tn, _round_up(n, 8))                      # never exceed the (padded) row count
    tn = max(8, tn)
    if tn >= 128:
        tn = (tn // 128) * 128                         # lane/sublane friendly
    else:
        tn = (tn // 8) * 8
    return tn


def _rebalance_kernel(scores_ref, soft_ref, aux_ref, out_ref, *,
                      inv_temperature, n_rows, block_rows):
    i = pl.program_id(0)

    # Row-validity mask for the ragged last tile (replaces wrapper-side jnp.pad).
    row_ids = jax.lax.broadcasted_iota(jnp.int32, (block_rows, 1), 0) + i * block_rows
    valid = row_ids < n_rows                                             # [TN,1] bool

    # Upcast in vregs; zero OOB rows BEFORE exp so garbage can't make NaN/Inf.
    s = jnp.where(valid, scores_ref[...].astype(jnp.float32), 0.0)      # [TN,V]
    t = jnp.where(valid, soft_ref[...].astype(jnp.float32), 0.0)        # [TN,V]

    # Shared stable log-sum-exp core: d = s - max(s).  Since max(s/T) = max(s)/T
    # for T > 0, the T-scaled LSE reuses d (one cross-lane max, fewer temps).
    m = jnp.max(s, axis=1, keepdims=True)                               # [TN,1]
    d = s - m
    lse = jnp.log(jnp.sum(jnp.exp(d), axis=1, keepdims=True)) + m       # [TN,1]
    dT = d * inv_temperature
    lseT = jnp.log(jnp.sum(jnp.exp(dT), axis=1, keepdims=True))         # [TN,1] (max(dT)=0)
    red = jnp.sum(t * (dT - lseT), axis=1, keepdims=True)               # [TN,1]

    # Per-row weights (pre-mixed with lambda in the wrapper); zero OOB rows so
    # masked rows contribute exactly 0 to the partial sum.
    a_hard = jnp.where(valid, aux_ref[:, 0:1], 0.0)    # (1 - lambda) * w[hard_i]
    a_soft = jnp.where(valid, aux_ref[:, 1:2], 0.0)    # lambda * w[argmax(soft_i)]

    # Per-row: (1-l)*w_y*lse_i - l*w_soft*red_i.  The O(N) term (1-l)*w_y*s_y
    # is handled in the wrapper.
    row = a_hard * lse - a_soft * red                                   # [TN,1]
    out_ref[...] = jnp.sum(row, axis=0, keepdims=True)[None]            # [1,1,1]


def perspective_rebalance_loss(scores, soft_target, hard_target, class_weight,
                               temperature=10.0, lambda_=0.5, block_rows=None):
    """lambda_*soft_loss + (1-lambda_)*hard_loss, matching loss_type=3 forward."""
    assert float(temperature) > 0.0, "temperature must be > 0 (max(s/T)=max(s)/T reuse)"
    n, v = scores.shape
    lam = float(lambda_)
    hard = hard_target.astype(jnp.int32)
    w = class_weight.astype(jnp.float32)

    # O(N)-output gathers hoisted out of the kernel (removes ~half the XLU work).
    w_y = w[hard]                                                          # [N]
    s_y = jnp.take_along_axis(scores, hard[:, None], axis=1)[:, 0]         # [N]
    s_y = s_y.astype(jnp.float32)
    # NOTE: jnp.argmax vs torch.argmax may break ties differently; with the
    # Gaussian-smoothed soft targets of this module the max is unique.
    w_soft = w[jnp.argmax(soft_target, axis=1)]                            # [N]
    aux = jnp.stack([(1.0 - lam) * w_y, lam * w_soft], axis=1)             # [N, 2]
    aux = aux.astype(jnp.float32)

    if block_rows is None:
        tn = _auto_block_rows(n, v, jnp.dtype(scores.dtype).itemsize)
    else:
        tn = max(8, (int(block_rows) // 8) * 8)
    g = pl.cdiv(n, tn)

    kern = functools.partial(_rebalance_kernel,
                             inv_temperature=1.0 / float(temperature),
                             n_rows=n, block_rows=tn)
    partials = pl.pallas_call(
        kern,
        out_shape=jax.ShapeDtypeStruct((g, 1, 1), jnp.float32),
        grid_spec=pltpu.PrefetchScalarGridSpec(
            num_scalar_prefetch=0,
            grid=(g,),
            in_specs=[
                pl.BlockSpec((tn, v), lambda i: (i, 0)),   # scores (native dtype)
                pl.BlockSpec((tn, v), lambda i: (i, 0)),   # soft_target (native dtype)
                pl.BlockSpec((tn, 2), lambda i: (i, 0)),   # per-row weights (f32)
            ],
            out_specs=pl.BlockSpec((1, 1, 1), lambda i: (i, 0, 0)),
        ),
        compiler_params=pltpu.CompilerParams(
            dimension_semantics=("parallel",),
            vmem_limit_bytes=_VMEM_LIMIT_BYTES),
    )(scores, soft_target, aux)

    # Hoisted O(N) hard-target gather term: sum_i (1-l) * w_y_i * s_y_i.
    gather_term = (1.0 - lam) * jnp.sum(w_y * s_y)
    # Matches F.cross_entropy(..., reduction='none').mean(): divide by N.
    return (jnp.sum(partials) - gather_term) / n


def weight_init(p_tilde, gamma=0.5, alpha=1.0):
    """Reproduces PerspectiveRebalance.weightInit (pTilde is the class prior)."""
    uni = jnp.where(p_tilde != 0, 1.0, 0.0)
    uni = uni / jnp.sum(uni)
    prior_mix = (1.0 - gamma) * p_tilde + gamma * uni
    w = prior_mix ** (-alpha)
    w = w / jnp.sum(p_tilde * w)
    return w.astype(jnp.float32)


def _reference(scores, soft_target, hard_target, w, temperature=10.0, lambda_=0.5):
    """Pure-JAX reference mirroring the PyTorch forward (loss_type=3)."""
    n = scores.shape[0]
    logp = jax.nn.log_softmax(scores, axis=1)
    logp_y = logp[jnp.arange(n), hard_target]
    hard_loss = jnp.mean(-w[hard_target] * logp_y)

    logpT = jax.nn.log_softmax(scores / temperature, axis=1)
    red = jnp.sum(soft_target * logpT, axis=1)
    w_soft = w[jnp.argmax(soft_target, axis=1)]
    soft_loss = -jnp.mean(w_soft * red)
    return lambda_ * soft_loss + (1.0 - lambda_) * hard_loss


if __name__ == "__main__":
    key = jax.random.PRNGKey(0)
    # Small shapes: 20 rois, classNum=32 views (pTilde_32).
    N, V = 20, 32
    k1, k2, k3 = jax.random.split(key, 3)

    scores = jax.random.normal(k1, (N, V), jnp.float32)
    hard_target = jax.random.randint(k2, (N,), 0, V, jnp.int32)

    # Gaussian-smoothed soft target centered on the hard label (as in the paper).
    pos = jnp.arange(V, dtype=jnp.float32)
    dist = pos[None, :] - hard_target[:, None].astype(jnp.float32)
    soft_target = jnp.exp(-0.5 * (dist / 2.0) ** 2)
    soft_target = soft_target / jnp.sum(soft_target, axis=1, keepdims=True)

    # Deterministic synthetic pTilde (all entries > 0).
    # TODO(synk): original module loads pTilde from an .npy checkpoint file.
    p_tilde = jax.nn.softmax(jax.random.normal(k3, (V,), jnp.float32))
    class_weight = weight_init(p_tilde, gamma=0.5)

    ref = _reference(scores, soft_target, hard_target, class_weight,
                     temperature=10.0, lambda_=0.5)

    # Explicit tiny tile: 3 grid steps, last tile has 4 masked (OOB) rows.
    loss_tiled = perspective_rebalance_loss(scores, soft_target, hard_target,
                                            class_weight, temperature=10.0,
                                            lambda_=0.5, block_rows=8)
    loss_tiled = jax.block_until_ready(loss_tiled)
    np.testing.assert_allclose(np.asarray(loss_tiled), np.asarray(ref),
                               rtol=1e-5, atol=1e-5)

    # Auto tile selection (single tile covering all rows, masked tail).
    loss_auto = perspective_rebalance_loss(scores, soft_target, hard_target,
                                           class_weight, temperature=10.0,
                                           lambda_=0.5)
    loss_auto = jax.block_until_ready(loss_auto)
    np.testing.assert_allclose(np.asarray(loss_auto), np.asarray(ref),
                               rtol=1e-5, atol=1e-5)

    print("KERNEL_OK")
</pallas_src>

<mosaic_0001>
module attributes {stable_mosaic.version = 11 : i64} {
  func.func @_rebalance_kernel(%arg0: i32, %arg1: memref<8x32xf32, #tpu.memory_space<vmem>>, %arg2: memref<8x32xf32, #tpu.memory_space<vmem>>, %arg3: memref<8x2xf32, #tpu.memory_space<vmem>>, %arg4: memref<1x1x1xf32, #tpu.memory_space<vmem>>) attributes {dimension_semantics = [#tpu.dimension_semantics<parallel>], iteration_bounds = array<i64: 3>, scalar_prefetch = 0 : i64, scratch_operands = 0 : i64, tpu.core_type = #tpu.core_type<tc>, window_params = [{transform_indices = @transform_0, window_bounds = array<i64: 8, 32>}, {transform_indices = @transform_1, window_bounds = array<i64: 8, 32>}, {transform_indices = @transform_2, window_bounds = array<i64: 8, 2>}, {transform_indices = @transform_3, window_bounds = array<i64: 1, 1, 1>}]} {
    %0 = tpu.iota {dimensions = array<i32: 0>} : vector<8x1xi32>
    %c8_i32 = arith.constant 8 : i32
    %1 = arith.muli %arg0, %c8_i32 : i32
    %2 = vector.broadcast %1 : i32 to vector<8x1xi32>
    %3 = arith.addi %0, %2 : vector<8x1xi32>
    %c20_i32 = arith.constant 20 : i32
    %4 = vector.broadcast %c20_i32 : i32 to vector<8x1xi32>
    %5 = arith.cmpi slt, %3, %4 : vector<8x1xi32>
    %c0 = arith.constant 0 : index
    %c0_0 = arith.constant 0 : index
    %6 = vector.load %arg1[%c0, %c0_0] : memref<8x32xf32, #tpu.memory_space<vmem>>, vector<8x32xf32>
    %cst = arith.constant 0.000000e+00 : f32
    %7 = vector.shape_cast %5 : vector<8x1xi1> to vector<8x1xi1>
    %8 = vector.broadcast %7 : vector<8x1xi1> to vector<8x32xi1>
    %9 = vector.broadcast %cst : f32 to vector<8x32xf32>
    %10 = arith.select %8, %6, %9 : vector<8x32xi1>, vector<8x32xf32>
    %c0_1 = arith.constant 0 : index
    %c0_2 = arith.constant 0 : index
    %11 = vector.load %arg2[%c0_1, %c0_2] : memref<8x32xf32, #tpu.memory_space<vmem>>, vector<8x32xf32>
    %cst_3 = arith.constant 0.000000e+00 : f32
    %12 = vector.shape_cast %5 : vector<8x1xi1> to vector<8x1xi1>
    %13 = vector.broadcast %12 : vector<8x1xi1> to vector<8x32xi1>
    %14 = vector.broadcast %cst_3 : f32 to vector<8x32xf32>
    %15 = arith.select %13, %11, %14 : vector<8x32xi1>, vector<8x32xf32>
    %cst_4 = arith.constant dense<0xFF800000> : vector<8xf32>
    %16 = vector.multi_reduction <maximumf>, %10, %cst_4 [1] : vector<8x32xf32> to vector<8xf32>
    %17 = vector.shape_cast %16 : vector<8xf32> to vector<8x1xf32>
    %18 = vector.broadcast %17 : vector<8x1xf32> to vector<8x32xf32>
    %19 = arith.subf %10, %18 : vector<8x32xf32>
    %20 = math.exp %19 : vector<8x32xf32>
    %cst_5 = arith.constant dense<0.000000e+00> : vector<8xf32>
    %21 = vector.multi_reduction <add>, %20, %cst_5 [1] : vector<8x32xf32> to vector<8xf32>
    %22 = vector.shape_cast %21 : vector<8xf32> to vector<8x1xf32>
    %23 = math.log %22 : vector<8x1xf32>
    %24 = arith.addf %23, %17 : vector<8x1xf32>
    %cst_6 = arith.constant 1.000000e-01 : f32
    %25 = vector.broadcast %cst_6 : f32 to vector<8x32xf32>
    %26 = arith.mulf %19, %25 : vector<8x32xf32>
    %27 = math.exp %26 : vector<8x32xf32>
    %cst_7 = arith.constant dense<0.000000e+00> : vector<8xf32>
    %28 = vector.multi_reduction <add>, %27, %cst_7 [1] : vector<8x32xf32> to vector<8xf32>
    %29 = vector.shape_cast %28 : vector<8xf32> to vector<8x1xf32>
    %30 = math.log %29 : vector<8x1xf32>
    %31 = vector.broadcast %30 : vector<8x1xf32> to vector<8x32xf32>
    %32 = arith.subf %26, %31 : vector<8x32xf32>
    %33 = arith.mulf %15, %32 : vector<8x32xf32>
    %cst_8 = arith.constant dense<0.000000e+00> : vector<8xf32>
    %34 = vector.multi_reduction <add>, %33, %cst_8 [1] : vector<8x32xf32> to vector<8xf32>
    %35 = vector.shape_cast %34 : vector<8xf32> to vector<8x1xf32>
    %c0_9 = arith.constant 0 : index
    %c0_10 = arith.constant 0 : index
    %36 = vector.load %arg3[%c0_9, %c0_10] : memref<8x2xf32, #tpu.memory_space<vmem>>, vector<8x1xf32>
    %cst_11 = arith.constant 0.000000e+00 : f32
    %37 = vector.broadcast %cst_11 : f32 to vector<8x1xf32>
    %38 = arith.select %5, %36, %37 : vector<8x1xi1>, vector<8x1xf32>
    %c0_12 = arith.constant 0 : index
    %c1 = arith.constant 1 : index
    %39 = vector.load %arg3[%c0_12, %c1] : memref<8x2xf32, #tpu.memory_space<vmem>>, vector<8x1xf32>
    %cst_13 = arith.constant 0.000000e+00 : f32
    %40 = vector.broadcast %cst_13 : f32 to vector<8x1xf32>
    %41 = arith.select %5, %39, %40 : vector<8x1xi1>, vector<8x1xf32>
    %42 = arith.mulf %38, %24 : vector<8x1xf32>
    %43 = arith.mulf %41, %35 : vector<8x1xf32>
    %44 = arith.subf %42, %43 : vector<8x1xf32>
    %cst_14 = arith.constant dense<0.000000e+00> : vector<1xf32>
    %45 = vector.multi_reduction <add>, %44, %cst_14 [0] : vector<8x1xf32> to vector<1xf32>
    %46 = vector.shape_cast %45 : vector<1xf32> to vector<1x1xf32>
    %47 = vector.shape_cast %46 : vector<1x1xf32> to vector<1x1x1xf32>
    %c0_15 = arith.constant 0 : index
    %c0_16 = arith.constant 0 : index
    %c0_17 = arith.constant 0 : index
    %48 = vector.load %arg4[%c0_15, %c0_16, %c0_17] : memref<1x1x1xf32, #tpu.memory_space<vmem>>, vector<1x1x1xf32>
    tpu.vector_store %arg4[%c0_15, %c0_16, %c0_17], %47 {strides = array<i32>} : memref<1x1x1xf32, #tpu.memory_space<vmem>>, vector<1x1x1xf32>,
    return
  }
  func.func @transform_0(%arg0: i32) -> (i32, i32) {
    %c0_i32 = arith.constant 0 : i32
    %c0_i32_0 = arith.constant 0 : i32
    return %arg0, %c0_i32 : i32, i32
  }
  func.func @transform_1(%arg0: i32) -> (i32, i32) {
    %c0_i32 = arith.constant 0 : i32
    %c0_i32_0 = arith.constant 0 : i32
    return %arg0, %c0_i32 : i32, i32
  }
  func.func @transform_2(%arg0: i32) -> (i32, i32) {
    %c0_i32 = arith.constant 0 : i32
    %c0_i32_0 = arith.constant 0 : i32
    return %arg0, %c0_i32 : i32, i32
  }
  func.func @transform_3(%arg0: i32) -> (i32, i32, i32) {
    %c0_i32 = arith.constant 0 : i32
    %c0_i32_0 = arith.constant 0 : i32
    %c0_i32_1 = arith.constant 0 : i32
    return %arg0, %c0_i32, %c0_i32_0 : i32, i32, i32
  }
}

</mosaic_0001>

<llo_original>
// kernel: tpu_custom_call.1
$region0: #{tpu_custom_call.1}
  #allocation0 [shape = 'u32[]', space=smem, size = 0x4, offset = 0x4, fixed_abs, tag = 'smem constant byte address 0x4 - core index']
  #allocation1 [shape = 'u32[144,128]{1,0:T(1,128)}', space=vmem, size = 0x12000, scoped, tag = 'internal scratch']
  %s0 = inlined_call_operand.vmem [shape: f32[20,32], index: 0, kind: input, shape index: {}]
  %s1 = inlined_call_operand.hbm [shape: f32[20,32], index: 1, kind: input, shape index: {}]
  %s2 = inlined_call_operand.vmem [shape: f32[20,2], index: 2, kind: input, shape index: {}]
  %s3 = inlined_call_operand.vmem [shape: f32[3,1,1], index: 3, kind: output, shape index: {}]
  %s4 = sld [smem:[#allocation0]]
  $region49: #{tpu_custom_call.1} parent=0
    _
  %s6 = ssub.s32 1, %s4
  %s7 = scalar_select 0, %s6, %s4
  $region1: #{tpu_custom_call.1} parent=0
    #allocation2 [shape = 'u8[8192]{0}', space=vmem, size = 0x2000, scoped, tag = 'input window, operand 1']
    #allocation3 [shape = 's32[2]{0}', space=sflag, size = 0x8, scoped, tag = 'scoped memory for tpu_custom_call.1']
    %8 = vsyncpa [#allocation3], 0
    %s9 = scalar_lea.sflag [#allocation3], 1
    %10 = vsyncpa %s9, 0
    loop: start=0, step=1, limit=5
    $region2: #{tpu_custom_call.1} parent=1 // loop_pre_header
      _
    $region3: #{tpu_custom_call.1} parent=1 // loop_header
      %s12 = sphi 0, %s16
      %p13 = scmp.ge.s32.totalorder %s12, 5
      %s22 = sphi 0, %s24
      %s25 = sphi 0, %s22
      %s26 = sphi 0, %s25
      %s42 = sphi 0, %s26
      %s48 = sphi 0, %s50
      %s51 = sphi 0, %s48
      %s52 = sphi 0, %s51
      %s68 = sphi 0, %s52
      %s74 = sphi 0, %s76
      %s77 = sphi 0, %s74
      %s78 = sphi 0, %s77
      %s94 = sphi 0, %s78
      %s100 = sphi 0, %s102
      %s103 = sphi 0, %s100
      %s104 = sphi 0, %s103
      %s120 = sphi 0, %s104
    $region4: #{tpu_custom_call.1} parent=1 // loop_header_branch
      %15 = sbr.rel (%p13) target = $region8
    $region5: #{tpu_custom_call.1} parent=1 // loop_body
      %s17 = ssub.s32 %s12, 1
      %s18 = ssub.s32 %s12, 2
      %s19 = sadd.s32 %s12, 1
      %s20 = ssub.s32 %s12, %s19
      %p21 = scmp.eq.s32.totalorder %s20, 0
      %s23 = sadd.s32 %s22, 1
      %s24 = scalar_select %p21, %s22, %s23
      %p27 = pneg %p21
      %p28 = scmp.eq.s32.totalorder %s12, 2
      %p29 = por %p27, %p28
      %p30 = scmp.ne.s32.totalorder %s22, %s25
      %p31 = scmp.eq.s32.totalorder %s12, 0
      %p32 = por %p30, %p31
      %p33 = scmp.ne.s32.totalorder %s22, %s25
      %p34 = scmp.eq.s32.totalorder %s17, 2
      %p35 = por %p33, %p34
      %p36 = scmp.ne.s32.totalorder %s25, %s26
      %p37 = scmp.eq.s32.totalorder %s17, 0
      %p38 = por %p36, %p37
      %p39 = scmp.ne.s32.totalorder %s25, %s26
      %p40 = scmp.eq.s32.totalorder %s18, 2
      %p41 = por %p39, %p40
      %p43 = scmp.ne.s32.totalorder %s26, %s42
      %p44 = scmp.eq.s32.totalorder %s18, 0
      %p45 = por %p43, %p44
      %s46 = ssub.s32 %s12, %s19
      %p47 = scmp.eq.s32.totalorder %s46, 0
      %s49 = sadd.s32 %s48, 1
      %s50 = scalar_select %p47, %s48, %s49
      %p53 = pneg %p47
      %p54 = scmp.eq.s32.totalorder %s12, 2
      %p55 = por %p53, %p54
      %p56 = scmp.ne.s32.totalorder %s48, %s51
      %p57 = scmp.eq.s32.totalorder %s12, 0
      %p58 = por %p56, %p57
      %p59 = scmp.ne.s32.totalorder %s48, %s51
      %p60 = scmp.eq.s32.totalorder %s17, 2
      %p61 = por %p59, %p60
      %p62 = scmp.ne.s32.totalorder %s51, %s52
      %p63 = scmp.eq.s32.totalorder %s17, 0
      %p64 = por %p62, %p63
      %p65 = scmp.ne.s32.totalorder %s51, %s52
      %p66 = scmp.eq.s32.totalorder %s18, 2
      %p67 = por %p65, %p66
      %p69 = scmp.ne.s32.totalorder %s52, %s68
      %p70 = scmp.eq.s32.totalorder %s18, 0
      %p71 = por %p69, %p70
      %s72 = ssub.s32 %s12, %s19
      %p73 = scmp.eq.s32.totalorder %s72, 0
      %s75 = sadd.s32 %s74, 1
      %s76 = scalar_select %p73, %s74, %s75
      %p79 = pneg %p73
      %p80 = scmp.eq.s32.totalorder %s12, 2
      %p81 = por %p79, %p80
      %p82 = scmp.ne.s32.totalorder %s74, %s77
      %p83 = scmp.eq.s32.totalorder %s12, 0
      %p84 = por %p82, %p83
      %p85 = scmp.ne.s32.totalorder %s74, %s77
      %p86 = scmp.eq.s32.totalorder %s17, 2
      %p87 = por %p85, %p86
      %p88 = scmp.ne.s32.totalorder %s77, %s78
      %p89 = scmp.eq.s32.totalorder %s17, 0
      %p90 = por %p88, %p89
      %p91 = scmp.ne.s32.totalorder %s77, %s78
      %p92 = scmp.eq.s32.totalorder %s18, 2
      %p93 = por %p91, %p92
      %p95 = scmp.ne.s32.totalorder %s78, %s94
      %p96 = scmp.eq.s32.totalorder %s18, 0
      %p97 = por %p95, %p96
      %s98 = ssub.s32 %s12, %s19
      %p99 = scmp.eq.s32.totalorder %s98, 0
      %s101 = sadd.s32 %s100, 1
      %s102 = scalar_select %p99, %s100, %s101
      %p105 = pneg %p99
      %p106 = scmp.eq.s32.totalorder %s12, 2
      %p107 = por %p105, %p106
      %p108 = scmp.ne.s32.totalorder %s100, %s103
      %p109 = scmp.eq.s32.totalorder %s12, 0
      %p110 = por %p108, %p109
      %p111 = scmp.ne.s32.totalorder %s100, %s103
      %p112 = scmp.eq.s32.totalorder %s17, 2
      %p113 = por %p111, %p112
      %p114 = scmp.ne.s32.totalorder %s103, %s104
      %p115 = scmp.eq.s32.totalorder %s17, 0
      %p116 = por %p114, %p115
      %p117 = scmp.ne.s32.totalorder %s103, %s104
      %p118 = scmp.eq.s32.totalorder %s18, 2
      %p119 = por %p117, %p118
      %p121 = scmp.ne.s32.totalorder %s104, %s120
      %p122 = scmp.eq.s32.totalorder %s18, 0
      %p123 = por %p121, %p122
      %p124 = scmp.le.s32.totalorder 1, %s12
      %p125 = scmp.lt.s32.totalorder %s12, 4
      %p126 = pnand %p124, %p125
      %p127 = pneg %p126
      // Predicated region
      $region9: #{tpu_custom_call.1} parent=5 // pred_check
        _
      $region10: #{tpu_custom_call.1} parent=5 // pred_check_branch
        %129 = sbr.rel (%p126) target = $region12
      $region11: #{tpu_custom_call.1} parent=5 // pred_region
        %s130 = ssub.s32 %s12, 1
      $region12: #{tpu_custom_call.1} parent=5 // pred_fallthru
        _
      %p131 = scmp.lt.s32.totalorder %s12, 3
      // Predicated region
      $region13: #{tpu_custom_call.1} parent=5 // pred_check
        %p132 = pneg %p131
      $region14: #{tpu_custom_call.1} parent=5 // pred_check_branch
        %134 = sbr.rel (%p132) target = $region16
      $region15: #{tpu_custom_call.1} parent=5 // pred_region
        // Predicated region
        $region17: #{tpu_custom_call.1} parent=15 // pred_check
          %p135 = pneg %p32
        $region18: #{tpu_custom_call.1} parent=15 // pred_check_branch
          %137 = sbr.rel (%p135) target = $region20
        $region19: #{tpu_custom_call.1} parent=15 // pred_region
          %p138 = scmp.lt.s32.totalorder %s12, 2
          %s139 = scalar_select %p138, %s12, 2
          %s140 = smul.addr %s139, 8
          %s141 = scalar_lea.vmem %s0, %s140
        $region20: #{tpu_custom_call.1} parent=15 // pred_fallthru
          _
        // Predicated region
        $region21: #{tpu_custom_call.1} parent=15 // pred_check
          %p142 = pneg %p58
        $region22: #{tpu_custom_call.1} parent=15 // pred_check_branch
          %144 = sbr.rel (%p142) target = $region24
        $region23: #{tpu_custom_call.1} parent=15 // pred_region
          %s145 = sand.u32 %s48, 1
          %s146 = scalar_lea.sflag [#allocation3], %s145
          %s147 = sand.u32 %s48, 1
          %s148 = smul.addr %s147, 8
          %s149 = scalar_lea.vmem [#allocation2], %s148
          %s151 = ssub.s32 128, 128
          %152 = vsyncadd %s146, %s151
          %s153 = smul.addr %s12, 128
          %s154 = scalar_lea.hbm %s1, %s153
          %s156 = sshll.u32 %s149, 4
          %s157 = int_to_ptr.vmem [resolvable:$true] %s156
          %159 = dma.hbm_to_vmem [thread:$0]  %s154, 128, %s157, %s146
        $region24: #{tpu_custom_call.1} parent=15 // pred_fallthru
          _
        // Predicated region
        $region25: #{tpu_custom_call.1} parent=15 // pred_check
          %p160 = pneg %p84
        $region26: #{tpu_custom_call.1} parent=15 // pred_check_branch
          %162 = sbr.rel (%p160) target = $region28
        $region27: #{tpu_custom_call.1} parent=15 // pred_region
          %p163 = scmp.lt.s32.totalorder %s12, 2
          %s164 = scalar_select %p163, %s12, 2
          %s165 = smul.addr %s164, 8
          %s166 = scalar_lea.vmem %s2, %s165
        $region28: #{tpu_custom_call.1} parent=15 // pred_fallthru
          _
      $region16: #{tpu_custom_call.1} parent=5 // pred_fallthru
        _
      %p167 = scmp.le.s32.totalorder 1, %s12
      %p168 = scmp.lt.s32.totalorder %s12, 4
      %p169 = pnand %p167, %p168
      %p170 = pneg %p169
      // Predicated region
      $region29: #{tpu_custom_call.1} parent=5 // pred_check
        _
      $region30: #{tpu_custom_call.1} parent=5 // pred_check_branch
        %172 = sbr.rel (%p169) target = $region32
      $region31: #{tpu_custom_call.1} parent=5 // pred_region
        %s173 = ssub.s32 %s12, 1
        %s174 = sand.u32 %s51, 1
        %s175 = scalar_lea.sflag [#allocation3], %s174
        %s176 = sand.u32 %s51, 1
        %s177 = smul.addr %s176, 8
        %s178 = scalar_lea.vmem [#allocation2], %s177
        // Predicated region
        $region33: #{tpu_custom_call.1} parent=31 // pred_check
          %p179 = pneg %p64
        $region34: #{tpu_custom_call.1} parent=31 // pred_check_branch
          %181 = sbr.rel (%p179) target = $region36
        $region35: #{tpu_custom_call.1} parent=31 // pred_region
          %182 = dma.done %s175, 128
        $region36: #{tpu_custom_call.1} parent=31 // pred_fallthru
          _
        %p183 = scmp.lt.s32.totalorder %s17, 2
        %s184 = scalar_select %p183, %s17, 2
        %s185 = smul.addr %s184, 8
        %s186 = scalar_lea.vmem %s0, %s185
        %p187 = pneg %p38
        %p188 = pneg %p35
        %s189 = sand.u32 %s51, 1
        %s190 = scalar_lea.sflag [#allocation3], %s189
        %s191 = sand.u32 %s51, 1
        %s192 = smul.addr %s191, 8
        %s193 = scalar_lea.vmem [#allocation2], %s192
        %p194 = pneg %p64
        %p195 = pneg %p61
        %p196 = scmp.lt.s32.totalorder %s17, 2
        %s197 = scalar_select %p196, %s17, 2
        %s198 = smul.addr %s197, 8
        %s199 = scalar_lea.vmem %s2, %s198
        %p200 = pneg %p90
        %p201 = pneg %p87
        %p202 = pneg %p116
        %p203 = pneg %p113
        %p204 = scmp.lt.s32.totalorder %s17, 2
        %s205 = scalar_select %p204, %s17, 2
        %s206 = scalar_lea.vmem %s3, %s205
        %p207 = scmp.lt.s32.totalorder %s17, 2
        %s208 = scalar_select %p207, %s17, 2
        %s209 = smul.addr %s208, 8
        %s210 = scalar_lea.vmem %s0, %s209
        %p211 = scmp.lt.s32.totalorder %s17, 2
        %s212 = scalar_select %p211, %s17, 2
        %s213 = smul.addr %s212, 8
        %s214 = scalar_lea.vmem %s2, %s213
        %p215 = scmp.lt.s32.totalorder %s17, 2
        %s216 = scalar_select %p215, %s17, 2
        %s217 = scalar_lea.vmem %s3, %s216
        %v218 = vlaneseq
        %v219 = vshrl.u32 %v218, 7
        %s220 = smul.u32 %s17, 8
        %v221 = vstv %s220
        %v222 = vadd.s32 %v219, %v221
        %vm223 = vcmp.lt.s32.totalorder %v222, 20
        %v224 = vld [vmem:[%s210] sm:$0xff]
        %v225 = vsel %vm223, 1, 0
        %vm226 = vcmp.eq.s32.totalorder %v225, 1
        %v227 = vsel %vm226, %v224, 0.0
        %v228 = vld [vmem:[%s178] sm:$0xff]
        %v229 = vsel %vm226, %v228, 0.0
        %vm230 = vcmask 261120
        %v231 = vsel %vm230, %v227, -inf
        %232 = vmax.xlane.f32.xlu0 %v231
        %v233 = vpop.xlane.xlu0 %232
        %v234 = vsub.f32 %v227, %v233
        %v235 = vmul.f32 %v234, 1.442695
        %v236 = vpow.pop %v235
        %v237 = vsel %vm230, %v236, 0.0
        %238 = vadd.xlane.f32.xlu0 %v237
        %v239 = vpop.xlane.xlu0 %238
        %v240 = vlog2.pop %v239
        %v241 = vmul.f32 %v240, 0.6931472
        %v242 = vadd.f32 %v241, %v233
        %v243 = vmul.f32 %v234, 0.1
        %v244 = vmul.f32 %v243, 1.442695
        %v245 = vpow.pop %v244
        %v246 = vsel %vm230, %v245, 0.0
        %247 = vadd.xlane.f32.xlu0 %v246
        %v248 = vpop.xlane.xlu0 %247
        %v249 = vlog2.pop %v248
        %v250 = vmul.f32 %v249, 0.6931472
        %v251 = vsub.f32 %v243, %v250
        %v252 = vmul.f32 %v229, %v251
        %v253 = vsel %vm230, %v252, 0.0
        %254 = vadd.xlane.f32.xlu0 %v253
        %v255 = vpop.xlane.xlu0 %254
        %v256 = vld [vmem:[%s214] sm:$0xff]
        %v257 = vsel %vm223, %v256, 0.0
        %v258 = vmul.f32 %v257, %v242
        %v259 = vmul.f32 %v257, %v255
        %261 = vrot.lane.b32.xlu0 %v259, 127
        %v262 = vpop.permute.xlu0 %261
        %v264 = vsub.f32 %v258, %v262
        %vm265 = vcmask 7168
        %v266 = vsel %vm265, %v264, 0.0
        %v267 = vrot.slane %v266, 4
        %v268 = vadd.f32 %v266, %v267
        %v269 = vrot.slane %v268, 2
        %v270 = vadd.f32 %v268, %v269
        %v271 = vrot.slane %v270, 1
        %v272 = vadd.f32 %v270, %v271
        %vm273 = vcmask 0
        %274 = vst.msk [vmem:[%s217] sm:$0x1] %vm273, %v272
        %p275 = scmp.lt.s32.totalorder %s17, 2
        %s276 = scalar_select %p275, %s17, 2
        %s277 = scalar_lea.vmem %s3, %s276
        // Predicated region
        $region37: #{tpu_custom_call.1} parent=31 // pred_check
          %p278 = pneg %p113
        $region38: #{tpu_custom_call.1} parent=31 // pred_check_branch
          %280 = sbr.rel (%p278) target = $region40
        $region39: #{tpu_custom_call.1} parent=31 // pred_region
          _
        $region40: #{tpu_custom_call.1} parent=31 // pred_fallthru
          _
      $region32: #{tpu_custom_call.1} parent=5 // pred_fallthru
        _
      %p281 = scmp.le.s32.totalorder 2, %s12
      // Predicated region
      $region41: #{tpu_custom_call.1} parent=5 // pred_check
        %p282 = pneg %p281
      $region42: #{tpu_custom_call.1} parent=5 // pred_check_branch
        %284 = sbr.rel (%p282) target = $region44
      $region43: #{tpu_custom_call.1} parent=5 // pred_region
        %s285 = ssub.s32 %s12, 2
        // Predicated region
        $region45: #{tpu_custom_call.1} parent=43 // pred_check
          %p286 = pneg %p119
        $region46: #{tpu_custom_call.1} parent=43 // pred_check_branch
          %288 = sbr.rel (%p286) target = $region48
        $region47: #{tpu_custom_call.1} parent=43 // pred_region
          %p289 = scmp.lt.s32.totalorder %s18, 2
          %s290 = scalar_select %p289, %s18, 2
          %s291 = scalar_lea.vmem %s3, %s290
        $region48: #{tpu_custom_call.1} parent=43 // pred_fallthru
          _
      $region44: #{tpu_custom_call.1} parent=5 // pred_fallthru
        _
    $region6: #{tpu_custom_call.1} parent=1 // loop_footer
      %s16 = sadd.s32 1, %s12
    $region7: #{tpu_custom_call.1} parent=1 // loop_footer_branch
      %11 = sbr.rel target = $region3
    $region8: #{tpu_custom_call.1} parent=1 // loop_exit
      _
    %292 = vsyncpa [#allocation3], 1
    %s293 = scalar_lea.sflag [#allocation3], 1
    %294 = vsyncpa %s293, 1

</llo_original>
